<compile_context>
chip_gen: v5e
topology: v5e:2x2
jax: 0.10.0
libtpu: 0.0.40
codegen_flags: <defaults>
</compile_context>

<pallas_src>
import functools

import jax
import jax.numpy as jnp
from jax.experimental import pallas as pl
from jax.experimental.pallas import tpu as pltpu


def _round_up(x, m):
    return ((x + m - 1) // m) * m


def _cdiv(a, b):
    return -(-a // b)


def _vmem_capacity_bytes():
    try:
        return int(pltpu.get_tpu_info().vmem_capacity_bytes)
    except Exception:
        return 64 << 20  # conservative default (v7x per-TC VMEM)


def _row_axis_semantics(num_row_steps):
    """Shard the row-tile grid axis across TensorCores on 2-TC chips (v7x);
    single-TC chips (v5e/v6e) keep plain 'parallel'."""
    try:
        info = pltpu.get_tpu_info()
        n_tc = int(getattr(info, "num_cores", 0) or getattr(info, "core_count", 0) or 1)
        if n_tc >= 2 and num_row_steps >= n_tc and num_row_steps % n_tc == 0:
            return (pltpu.CORE_PARALLEL,)
    except Exception:
        pass
    return ("parallel",)


# ----------------------------------------------------------------------------
# Pallas kernel: fused shared-MLP (two folded 1x1 convs as block-diagonal
# matmuls + shift + ReLU) and max over the K neighbor blocks via lane rolls.
# ----------------------------------------------------------------------------
def _sa_mlp_kernel(x_ref, w1_ref, s1_ref, w2_ref, s2_ref, o_ref, *, c2, n_roll):
    # x_ref : (TM, K*Cin)  bf16   neighbors lane-packed along channels
    # w1_ref: (K*Cin, K*C1) bf16  block-diagonal (kron(I_K, W1))
    # w2_ref: (K*C1, K*C2)  bf16  block-diagonal (kron(I_K, W2))
    # s1/s2 : (1, K*C1) / (1, K*C2) f32  BN-folded per-neighbor-tiled shifts
    h = jnp.dot(x_ref[...], w1_ref[...], preferred_element_type=jnp.float32)
    h = jnp.maximum(h + s1_ref[...], 0.0)                     # BN1-folded + ReLU
    y = jnp.dot(h.astype(jnp.bfloat16), w2_ref[...],
                preferred_element_type=jnp.float32)
    y = jnp.maximum(y + s2_ref[...], 0.0)                     # BN2-folded + ReLU
    # Max over K neighbor blocks: log2(K) lane rotations (XLU) + max (VPU).
    # After the last step every C2-wide block holds the full max.
    for t in range(n_roll):
        y = jnp.maximum(y, pltpu.roll(y, shift=c2 << t, axis=1))
    o_ref[...] = y.astype(o_ref.dtype)


def _pack_params(params, k):
    """Block-diagonal bf16 weights + K-tiled f32 shifts."""
    w1, s1, w2, s2 = params
    w1_bd = jnp.kron(jnp.eye(k, dtype=w1.dtype), w1).astype(jnp.bfloat16)
    w2_bd = jnp.kron(jnp.eye(k, dtype=w2.dtype), w2).astype(jnp.bfloat16)
    s1_t = jnp.tile(s1, k).reshape(1, -1).astype(jnp.float32)
    s2_t = jnp.tile(s2, k).reshape(1, -1).astype(jnp.float32)
    return w1_bd, s1_t, w2_bd, s2_t


def _choose_tile(bs, bytes_per_row, fixed_bytes, vmem_budget, tile_m):
    avail = max(vmem_budget - fixed_bytes, 8 * bytes_per_row)
    tm_cap = max(8, min(tile_m, (avail // bytes_per_row) // 8 * 8))
    n_tiles = _cdiv(bs, tm_cap)
    # Balance the tiles so the last one is not mostly row padding.
    return max(8, _round_up(_cdiv(bs, n_tiles), 8))


def sa_mlp_packed(packed, params, k, *, tile_m=1024):
    """packed: (B*S, K*Cin) bf16 (neighbors lane-packed) -> (B*S, C2) f32."""
    BS, cin_tot = packed.shape
    w1, s1, w2, s2 = params
    cin, c1 = w1.shape
    c2 = w2.shape[1]
    assert cin_tot == k * cin
    c1_tot, c2_tot = k * c1, k * c2

    w1_bd, s1_t, w2_bd, s2_t = _pack_params(params, k)

    roll_reduce = k > 0 and (k & (k - 1)) == 0    # power-of-two K -> in-kernel max
    n_roll = (k.bit_length() - 1) if roll_reduce else 0

    # Per-generation VMEM budget (v7x: 64 MiB, v5e/v6e: 128 MiB physical).
    vmem_cap = _vmem_capacity_bytes()
    vmem_limit = max(32 << 20, min((vmem_cap * 3) // 4, 96 << 20))
    fixed = 2 * (w1_bd.size + w2_bd.size) * 2 + 2 * (s1_t.size + s2_t.size) * 4
    bytes_per_row = (2 * cin_tot * 2          # x block, bf16, double-buffered
                     + 2 * c2_tot * 2         # out block, bf16, double-buffered
                     + (c1_tot + 2 * c2_tot) * 4)   # f32 intermediates
    tm = _choose_tile(BS, bytes_per_row, fixed, vmem_limit // 2, tile_m)

    bs_pad = _round_up(BS, tm)
    if bs_pad != BS:
        packed = jnp.pad(packed, ((0, bs_pad - BS), (0, 0)))
    grid = (bs_pad // tm,)

    # NOTE: block last dims equal the full (unpadded) array dims -> legal
    # BlockSpecs without DMA'ing zero padding; output width K*C2 (=128 here)
    # keeps the store lane-dense.
    # TODO(synk): add pipeline_mode=pl.Buffered(3) on the x spec only if a
    # profile shows exposed DMA latency at small tiles.
    out = pl.pallas_call(
        functools.partial(_sa_mlp_kernel, c2=c2, n_roll=n_roll),
        out_shape=jax.ShapeDtypeStruct((bs_pad, c2_tot), jnp.bfloat16),
        grid=grid,
        in_specs=[
            pl.BlockSpec((tm, cin_tot), lambda i: (i, 0)),
            pl.BlockSpec((cin_tot, c1_tot), lambda i: (0, 0)),
            pl.BlockSpec((1, c1_tot), lambda i: (0, 0)),
            pl.BlockSpec((c1_tot, c2_tot), lambda i: (0, 0)),
            pl.BlockSpec((1, c2_tot), lambda i: (0, 0)),
        ],
        out_specs=pl.BlockSpec((tm, c2_tot), lambda i: (i, 0)),
        compiler_params=pltpu.CompilerParams(
            dimension_semantics=_row_axis_semantics(grid[0]),
            vmem_limit_bytes=vmem_limit,
        ),
    )(packed, w1_bd, s1_t, w2_bd, s2_t)

    if roll_reduce:
        res = out[:BS, :c2]                                   # every block = max
    else:
        res = out[:BS, :c2_tot].reshape(BS, k, c2).max(axis=1)
    return res.astype(jnp.float32)


# ----------------------------------------------------------------------------
# Plain-JAX glue: FPS sampling, kNN grouping, gathers (data-dependent indexing).
# ----------------------------------------------------------------------------
def square_distance(src, dst):
    # src: (B, S, C), dst: (B, N, C) -> (B, S, N) squared euclidean distances
    return (jnp.sum(src * src, -1)[..., None]
            + jnp.sum(dst * dst, -1)[:, None, :]
            - 2.0 * jnp.einsum("bsc,bnc->bsn", src, dst))


def index_points(points, idx):
    # points: (B, N, C), idx: (B, ...) int -> (B, ..., C)
    return jax.vmap(lambda p, i: p[i])(points, idx)


def farthest_point_sample(xyz, npoint):
    # TODO(synk): torch's farthest_point_sample starts from a random index;
    # here we start deterministically at index 0.
    B, N, _ = xyz.shape

    def body(i, state):
        centroids, distance, farthest = state
        centroids = centroids.at[:, i].set(farthest)
        centroid = jnp.take_along_axis(xyz, farthest[:, None, None], axis=1)  # (B,1,3)
        dist = jnp.sum((xyz - centroid) ** 2, axis=-1)                         # (B,N)
        distance = jnp.minimum(distance, dist)
        farthest = jnp.argmax(distance, axis=-1).astype(jnp.int32)
        return centroids, distance, farthest

    init = (jnp.zeros((B, npoint), jnp.int32),
            jnp.full((B, N), 1e10, jnp.float32),
            jnp.zeros((B,), jnp.int32))
    centroids, _, _ = jax.lax.fori_loop(0, npoint, body, init)
    return centroids


def transition_down_forward(params, xyz, points, *, npoint, nsample, tile_m=1024):
    """xyz: (B, N, 3), points: (B, N, D) -> (new_xyz (B,S,3), new_points (B,S,C2))"""
    B, N, _ = xyz.shape
    S, K = npoint, nsample

    fps_idx = farthest_point_sample(xyz, S)                  # (B, S)
    new_xyz = index_points(xyz, fps_idx)                     # (B, S, 3)

    dists = square_distance(new_xyz, xyz)                    # (B, S, N)
    _, idx = jax.lax.top_k(-dists, K)                        # (B, S, K) knn

    grouped_xyz = index_points(xyz, idx)                     # (B, S, K, 3)
    grouped_xyz_norm = grouped_xyz - new_xyz[:, :, None, :]
    grouped_points = index_points(points, idx)               # (B, S, K, D)
    new_points = jnp.concatenate([grouped_xyz_norm, grouped_points], axis=-1)

    # Lane-pack the K neighbors along the channel axis: a plain reshape
    # (no transpose) and a single bf16 cast before the kernel.
    packed = new_points.reshape(B * S, K * new_points.shape[-1]).astype(jnp.bfloat16)

    out = sa_mlp_packed(packed, params, K, tile_m=tile_m)    # (B*S, C2) f32
    return new_xyz, out.reshape(B, S, -1)


# Pure-JAX reference of the fused MLP (f32 everywhere) for a sanity check.
def sa_mlp_ref(grouped, w1, s1, w2, s2):
    # grouped: (B, S, K, Cin) f32
    h = jnp.maximum(grouped @ w1 + s1, 0.0)
    h = jnp.maximum(h @ w2 + s2, 0.0)
    return jnp.max(h, axis=-2)                               # max over K


# ----------------------------------------------------------------------------
# Deterministic parameter init: Conv2d(1x1) weight/bias + eval-mode BN affine,
# folded host-side into (weight, shift) per layer.
# ----------------------------------------------------------------------------
def init_params(key, channels):
    cin, c1, c2 = channels
    ks = jax.random.split(key, 8)
    eps = 1e-5

    def layer(kw, kb, kg, kbt, ci, co):
        w = jax.random.normal(kw, (ci, co), jnp.float32) * 0.1   # conv weight^T
        b = jax.random.normal(kb, (co,), jnp.float32) * 0.1      # conv bias
        gamma = 1.0 + 0.1 * jax.random.normal(kg, (co,), jnp.float32)
        beta = 0.1 * jax.random.normal(kbt, (co,), jnp.float32)
        # eval-mode BN with running_mean=0, running_var=1, folded into w / shift
        scale = gamma / jnp.sqrt(1.0 + eps)
        w_folded = w * scale[None, :]
        shift = b * scale + beta
        return w_folded, shift

    w1, s1 = layer(ks[0], ks[1], ks[2], ks[3], cin, c1)
    w2, s2 = layer(ks[4], ks[5], ks[6], ks[7], c1, c2)
    return (w1, s1, w2, s2)


if __name__ == "__main__":
    # Module config: TransitionDown(k=8, nneighbor=4, channels=[16, 32, 32])
    # => channels[0] = 3 + D, so the point feature dim D = 13.
    B, N, D = 2, 16, 13
    npoint, nsample = 8, 4
    channels = (3 + D, 32, 32)

    key = jax.random.PRNGKey(0)
    kx, kp, kparam = jax.random.split(key, 3)
    xyz = jax.random.normal(kx, (B, N, 3), jnp.float32)
    points = jax.random.normal(kp, (B, N, D), jnp.float32)
    params = init_params(kparam, channels)

    new_xyz, new_points = transition_down_forward(
        params, xyz, points, npoint=npoint, nsample=nsample)
    jax.block_until_ready((new_xyz, new_points))

    assert new_xyz.shape == (B, npoint, 3)
    assert new_points.shape == (B, npoint, channels[-1])

    # Sanity check of the fused Pallas MLP against a plain-f32 reference
    # (loose tolerance: kernel uses bf16 operands/output with f32 accumulation).
    fps_idx = farthest_point_sample(xyz, npoint)
    nxyz = index_points(xyz, fps_idx)
    _, idx = jax.lax.top_k(-square_distance(nxyz, xyz), nsample)
    gxyz = index_points(xyz, idx) - nxyz[:, :, None, :]
    gpts = index_points(points, idx)
    grouped = jnp.concatenate([gxyz, gpts], axis=-1)          # (B, S, K, Cin)
    ref = sa_mlp_ref(grouped, *params)                        # (B, S, C2)
    max_err = float(jnp.max(jnp.abs(new_points - ref)))
    assert max_err < 0.25, f"max abs error vs f32 reference too large: {max_err}"

    print("KERNEL_OK")
</pallas_src>

<mosaic_0001>
module attributes {stable_mosaic.version = 11 : i64} {
  func.func @_sa_mlp_kernel(%arg0: i32, %arg1: memref<16x64xbf16, #tpu.memory_space<vmem>>, %arg2: memref<64x128xbf16, #tpu.memory_space<vmem>>, %arg3: memref<1x128xf32, #tpu.memory_space<vmem>>, %arg4: memref<128x128xbf16, #tpu.memory_space<vmem>>, %arg5: memref<1x128xf32, #tpu.memory_space<vmem>>, %arg6: memref<16x128xbf16, #tpu.memory_space<vmem>>) attributes {dimension_semantics = [#tpu.dimension_semantics<parallel>], iteration_bounds = array<i64: 1>, scalar_prefetch = 0 : i64, scratch_operands = 0 : i64, tpu.core_type = #tpu.core_type<tc>, window_params = [{transform_indices = @transform_0, window_bounds = array<i64: 16, 64>}, {pipeline_mode = #tpu.pipeline_mode<synchronous>, transform_indices = @transform_1, window_bounds = array<i64: 64, 128>}, {pipeline_mode = #tpu.pipeline_mode<synchronous>, transform_indices = @transform_2, window_bounds = array<i64: 1, 128>}, {pipeline_mode = #tpu.pipeline_mode<synchronous>, transform_indices = @transform_3, window_bounds = array<i64: 128, 128>}, {pipeline_mode = #tpu.pipeline_mode<synchronous>, transform_indices = @transform_4, window_bounds = array<i64: 1, 128>}, {transform_indices = @transform_5, window_bounds = array<i64: 16, 128>}]} {
    %c0 = arith.constant 0 : index
    %c0_0 = arith.constant 0 : index
    %0 = vector.load %arg1[%c0, %c0_0] : memref<16x64xbf16, #tpu.memory_space<vmem>>, vector<16x64xbf16>
    %c0_1 = arith.constant 0 : index
    %c0_2 = arith.constant 0 : index
    %1 = vector.load %arg2[%c0_1, %c0_2] : memref<64x128xbf16, #tpu.memory_space<vmem>>, vector<64x128xbf16>
    %cst = arith.constant dense<0.000000e+00> : vector<16x128xf32>
    %2 = tpu.matmul %0, %1, %cst {dimension_numbers = #tpu.dot_dimension_numbers<[1], [0], [0], [1], [0, 0, 1, 1], [], []>} : vector<16x64xbf16>, vector<64x128xbf16>, vector<16x128xf32> -> vector<16x128xf32>
    %c0_3 = arith.constant 0 : index
    %c0_4 = arith.constant 0 : index
    %3 = vector.load %arg3[%c0_3, %c0_4] : memref<1x128xf32, #tpu.memory_space<vmem>>, vector<1x128xf32>
    %4 = vector.broadcast %3 : vector<1x128xf32> to vector<16x128xf32>
    %5 = arith.addf %2, %4 : vector<16x128xf32>
    %cst_5 = arith.constant 0.000000e+00 : f32
    %6 = vector.broadcast %cst_5 : f32 to vector<16x128xf32>
    %7 = arith.maximumf %5, %6 : vector<16x128xf32>
    %8 = arith.truncf %7 : vector<16x128xf32> to vector<16x128xbf16>
    %c0_6 = arith.constant 0 : index
    %c0_7 = arith.constant 0 : index
    %9 = vector.load %arg4[%c0_6, %c0_7] : memref<128x128xbf16, #tpu.memory_space<vmem>>, vector<128x128xbf16>
    %cst_8 = arith.constant dense<0.000000e+00> : vector<16x128xf32>
    %10 = tpu.matmul %8, %9, %cst_8 {dimension_numbers = #tpu.dot_dimension_numbers<[1], [0], [0], [1], [0, 0, 1, 1], [], []>} : vector<16x128xbf16>, vector<128x128xbf16>, vector<16x128xf32> -> vector<16x128xf32>
    %c0_9 = arith.constant 0 : index
    %c0_10 = arith.constant 0 : index
    %11 = vector.load %arg5[%c0_9, %c0_10] : memref<1x128xf32, #tpu.memory_space<vmem>>, vector<1x128xf32>
    %12 = vector.broadcast %11 : vector<1x128xf32> to vector<16x128xf32>
    %13 = arith.addf %10, %12 : vector<16x128xf32>
    %cst_11 = arith.constant 0.000000e+00 : f32
    %14 = vector.broadcast %cst_11 : f32 to vector<16x128xf32>
    %15 = arith.maximumf %13, %14 : vector<16x128xf32>
    %c32_i32 = arith.constant 32 : i32
    %16 = tpu.dynamic_rotate %15 by %c32_i32 dim 1 : vector<16x128xf32>, i32 -> vector<16x128xf32>
    %17 = arith.maximumf %15, %16 : vector<16x128xf32>
    %c64_i32 = arith.constant 64 : i32
    %18 = tpu.dynamic_rotate %17 by %c64_i32 dim 1 : vector<16x128xf32>, i32 -> vector<16x128xf32>
    %19 = arith.maximumf %17, %18 : vector<16x128xf32>
    %20 = arith.truncf %19 : vector<16x128xf32> to vector<16x128xbf16>
    %c0_12 = arith.constant 0 : index
    %c0_13 = arith.constant 0 : index
    %21 = vector.load %arg6[%c0_12, %c0_13] : memref<16x128xbf16, #tpu.memory_space<vmem>>, vector<16x128xbf16>
    tpu.vector_store %arg6[%c0_12, %c0_13], %20 {strides = array<i32>} : memref<16x128xbf16, #tpu.memory_space<vmem>>, vector<16x128xbf16>,
    return
  }
  func.func @transform_0(%arg0: i32) -> (i32, i32) {
    %c0_i32 = arith.constant 0 : i32
    %c0_i32_0 = arith.constant 0 : i32
    return %arg0, %c0_i32 : i32, i32
  }
  func.func @transform_1(%arg0: i32) -> (i32, i32) {
    %c0_i32 = arith.constant 0 : i32
    %c0_i32_0 = arith.constant 0 : i32
    %c0_i32_1 = arith.constant 0 : i32
    return %c0_i32, %c0_i32_0 : i32, i32
  }
  func.func @transform_2(%arg0: i32) -> (i32, i32) {
    %c0_i32 = arith.constant 0 : i32
    %c0_i32_0 = arith.constant 0 : i32
    %c0_i32_1 = arith.constant 0 : i32
    return %c0_i32, %c0_i32_0 : i32, i32
  }
  func.func @transform_3(%arg0: i32) -> (i32, i32) {
    %c0_i32 = arith.constant 0 : i32
    %c0_i32_0 = arith.constant 0 : i32
    %c0_i32_1 = arith.constant 0 : i32
    return %c0_i32, %c0_i32_0 : i32, i32
  }
  func.func @transform_4(%arg0: i32) -> (i32, i32) {
    %c0_i32 = arith.constant 0 : i32
    %c0_i32_0 = arith.constant 0 : i32
    %c0_i32_1 = arith.constant 0 : i32
    return %c0_i32, %c0_i32_0 : i32, i32
  }
  func.func @transform_5(%arg0: i32) -> (i32, i32) {
    %c0_i32 = arith.constant 0 : i32
    %c0_i32_0 = arith.constant 0 : i32
    return %arg0, %c0_i32 : i32, i32
  }
}

</mosaic_0001>

<llo_original>
// kernel: tpu_custom_call.1
$region0: #{tpu_custom_call.1}
  #allocation0 [shape = 'u32[]', space=smem, size = 0x4, offset = 0x4, fixed_abs, tag = 'smem constant byte address 0x4 - core index']
  #allocation1 [shape = 'u32[72,128]{1,0:T(1,128)}', space=vmem, size = 0x9000, scoped, tag = 'internal scratch']
  %s0 = inlined_call_operand.hbm [shape: bf16[16,64], index: 0, kind: input, shape index: {}]
  %s1 = inlined_call_operand.hbm [shape: bf16[64,128], index: 1, kind: input, shape index: {}]
  %s2 = inlined_call_operand.vmem [shape: f32[1,128], index: 2, kind: input, shape index: {}]
  %s3 = inlined_call_operand.hbm [shape: bf16[128,128], index: 3, kind: input, shape index: {}]
  %s4 = inlined_call_operand.vmem [shape: f32[1,128], index: 4, kind: input, shape index: {}]
  %s5 = inlined_call_operand.hbm [shape: bf16[16,128], index: 5, kind: output, shape index: {}]
  %s6 = sld [smem:[#allocation0]]
  $region42: #{tpu_custom_call.1} parent=0
    _
  %s8 = ssub.s32 1, %s6
  %s9 = scalar_select 0, %s8, %s6
  $region1: #{tpu_custom_call.1} parent=0
    #allocation2 [shape = 'u8[4096]{0}', space=vmem, size = 0x1000, scoped, tag = 'input window, operand 0, single buffered']
    #allocation3 [shape = 's32[1]{0}', space=sflag, size = 0x4, scoped, tag = 'scoped memory for tpu_custom_call.1']
    #allocation4 [shape = 's32[1]{0}', space=sflag, size = 0x4, scoped, tag = 'scoped memory for tpu_custom_call.1']
    #allocation5 [shape = 'u8[16384]{0}', space=vmem, size = 0x4000, scoped, tag = 'input window, operand 1, single buffered']
    #allocation6 [shape = 's32[1]{0}', space=sflag, size = 0x4, scoped, tag = 'scoped memory for tpu_custom_call.1']
    #allocation7 [shape = 'u8[32768]{0}', space=vmem, size = 0x8000, scoped, tag = 'input window, operand 3, single buffered']
    #allocation8 [shape = 'u8[4096]{0}', space=vmem, size = 0x1000, scoped, tag = 'output window, operand 0, single buffered']
    %10 = vsyncpa [#allocation3], 0
    %11 = vsyncpa [#allocation6], 0
    %12 = vsyncpa [#allocation4], 0
    // Predicated region
    $region2: #{tpu_custom_call.1} parent=1 // pred_check
      _
    $region3: #{tpu_custom_call.1} parent=1 // pred_check_branch
      %14 = sbr.rel (0) target = $region5
    $region4: #{tpu_custom_call.1} parent=1 // pred_region
      %16 = vsyncadd [#allocation3], 0
      %s17 = sshll.u32 %s0, 4
      %s18 = int_to_ptr.hbm [resolvable:$true] %s17
      %s19 = sshll.u32 [#allocation2], 4
      %s20 = int_to_ptr.vmem [resolvable:$true] %s19
      %25 = dma.hbm_to_vmem [thread:$0]  %s18, 128, %s20, [#allocation3], 64, 64, 4
    $region5: #{tpu_custom_call.1} parent=1 // pred_fallthru
      _
    // Predicated region
    $region6: #{tpu_custom_call.1} parent=1 // pred_check
      _
    $region7: #{tpu_custom_call.1} parent=1 // pred_check_branch
      %27 = sbr.rel (0) target = $region9
    $region8: #{tpu_custom_call.1} parent=1 // pred_region
      %29 = vsyncadd [#allocation6], 0
      %s30 = sshll.u32 %s1, 4
      %s31 = int_to_ptr.hbm [resolvable:$true] %s30
      %s32 = sshll.u32 [#allocation5], 4
      %s33 = int_to_ptr.vmem [resolvable:$true] %s32
      %38 = dma.hbm_to_vmem [thread:$0]  %s31, 512, %s33, [#allocation6], 64, 64, 4
    $region9: #{tpu_custom_call.1} parent=1 // pred_fallthru
      _
    // Predicated region
    $region10: #{tpu_custom_call.1} parent=1 // pred_check
      _
    $region11: #{tpu_custom_call.1} parent=1 // pred_check_branch
      %40 = sbr.rel (0) target = $region13
    $region12: #{tpu_custom_call.1} parent=1 // pred_region
      _
    $region13: #{tpu_custom_call.1} parent=1 // pred_fallthru
      _
    // Predicated region
    $region14: #{tpu_custom_call.1} parent=1 // pred_check
      _
    $region15: #{tpu_custom_call.1} parent=1 // pred_check_branch
      %42 = sbr.rel (0) target = $region17
    $region16: #{tpu_custom_call.1} parent=1 // pred_region
      %44 = vsyncadd [#allocation6], 0
      %s45 = sshll.u32 %s3, 4
      %s46 = int_to_ptr.hbm [resolvable:$true] %s45
      %s47 = sshll.u32 [#allocation7], 4
      %s48 = int_to_ptr.vmem [resolvable:$true] %s47
      %53 = dma.hbm_to_vmem [thread:$0]  %s46, 1024, %s48, [#allocation6], 64, 64, 4
    $region17: #{tpu_custom_call.1} parent=1 // pred_fallthru
      _
    // Predicated region
    $region18: #{tpu_custom_call.1} parent=1 // pred_check
      _
    $region19: #{tpu_custom_call.1} parent=1 // pred_check_branch
      %55 = sbr.rel (0) target = $region21
    $region20: #{tpu_custom_call.1} parent=1 // pred_region
      _
    $region21: #{tpu_custom_call.1} parent=1 // pred_fallthru
      _
    // Predicated region
    $region22: #{tpu_custom_call.1} parent=1 // pred_check
      _
    $region23: #{tpu_custom_call.1} parent=1 // pred_check_branch
      %57 = sbr.rel (0) target = $region25
    $region24: #{tpu_custom_call.1} parent=1 // pred_region
      %59 = dma.done [#allocation3], 128
    $region25: #{tpu_custom_call.1} parent=1 // pred_fallthru
      _
    // Predicated region
    $region26: #{tpu_custom_call.1} parent=1 // pred_check
      _
    $region27: #{tpu_custom_call.1} parent=1 // pred_check_branch
      %61 = sbr.rel (0) target = $region29
    $region28: #{tpu_custom_call.1} parent=1 // pred_region
      %63 = dma.done [#allocation6], 512
    $region29: #{tpu_custom_call.1} parent=1 // pred_fallthru
      _
    // Predicated region
    $region30: #{tpu_custom_call.1} parent=1 // pred_check
      _
    $region31: #{tpu_custom_call.1} parent=1 // pred_check_branch
      %65 = sbr.rel (0) target = $region33
    $region32: #{tpu_custom_call.1} parent=1 // pred_region
      %67 = dma.done [#allocation6], 1024
    $region33: #{tpu_custom_call.1} parent=1 // pred_fallthru
      _
    %v69 = vld [vmem:[#allocation2] sm:$0xf]
    %v70 = vld [vmem:[#allocation2 + $0x4] sm:$0xf]
    %v71 = vld [vmem:[#allocation5] sm:$0xf]
    %v72 = vld [vmem:[#allocation5 + $0x4] sm:$0xf]
    %v73 = vld [vmem:[#allocation5 + $0x8] sm:$0xf]
    %v74 = vld [vmem:[#allocation5 + $0xc] sm:$0xf]
    %v75 = vld [vmem:[#allocation5 + $0x10] sm:$0xf]
    %v76 = vld [vmem:[#allocation5 + $0x14] sm:$0xf]
    %v77 = vld [vmem:[#allocation5 + $0x18] sm:$0xf]
    %v78 = vld [vmem:[#allocation5 + $0x1c] sm:$0xf]
    %v79 = vld [vmem:[%s2] sm:$0x1]
    %v81 = vperm.slane %v79, 0
    %v85 = vunpack.c.l.b16 %v69
    %v86 = vunpack.c.l.b16 %v70
    %v87 = vpack.c.b16 %v86, %v85
    %v96 = vunpack.c.l.b16 %v71
    %v97 = vunpack.c.l.b16 %v72
    %v98 = vunpack.c.l.b16 %v73
    %v99 = vunpack.c.l.b16 %v74
    %v100 = vunpack.c.l.b16 %v75
    %v101 = vunpack.c.l.b16 %v76
    %v102 = vunpack.c.l.b16 %v77
    %v103 = vunpack.c.l.b16 %v78
    %v104 = vpack.c.b16 %v97, %v96
    %v105 = vpack.c.b16 %v99, %v98
    %v106 = vpack.c.b16 %v101, %v100
    %v107 = vpack.c.b16 %v103, %v102
    %vm112 = vcmask 523264
    %v114 = vsel %vm112, %v87, 0
    %116 = vmatpush.bf16.msra.mxu0 0
    %117 = vmatpush.bf16.msra.mxu0 0
    %118 = vmatpush.bf16.msra.mxu0 0
    %119 = vmatpush.bf16.msra.mxu0 0
    %120 = vmatpush.bf16.msra.mxu0 %v107
    %121 = vmatpush.bf16.msra.mxu0 %v106
    %122 = vmatpush.bf16.msra.mxu0 %v105
    %123 = vmatpush.bf16.msra.mxu0 %v104
    %124 = vmatmul.bf16.gmra.mxu0 %v114
    %v125 = vpop.f32.mrf.mxu0
    %v126 = vadd.f32 %v81, %v125
    %v127 = vpop.f32.mrf.mxu0
    %v128 = vadd.f32 %v81, %v127
    %129 = vdwg.mxu0
    %v130 = vmax.f32 %v126, 0.0
    %v131 = vmax.f32 %v128, 0.0
    %v132 = vpack.c.bf16 %v131, %v130
    %v133 = vld [vmem:[#allocation7] sm:$0xf]
    %v134 = vld [vmem:[#allocation7 + $0x4] sm:$0xf]
    %v135 = vld [vmem:[#allocation7 + $0x8] sm:$0xf]
    %v136 = vld [vmem:[#allocation7 + $0xc] sm:$0xf]
    %v137 = vld [vmem:[#allocation7 + $0x10] sm:$0xf]
    %v138 = vld [vmem:[#allocation7 + $0x14] sm:$0xf]
    %v139 = vld [vmem:[#allocation7 + $0x18] sm:$0xf]
    %v140 = vld [vmem:[#allocation7 + $0x1c] sm:$0xf]
    %v141 = vld [vmem:[#allocation7 + $0x20] sm:$0xf]
    %v142 = vld [vmem:[#allocation7 + $0x24] sm:$0xf]
    %v143 = vld [vmem:[#allocation7 + $0x28] sm:$0xf]
    %v144 = vld [vmem:[#allocation7 + $0x2c] sm:$0xf]
    %v145 = vld [vmem:[#allocation7 + $0x30] sm:$0xf]
    %v146 = vld [vmem:[#allocation7 + $0x34] sm:$0xf]
    %v147 = vld [vmem:[#allocation7 + $0x38] sm:$0xf]
    %v148 = vld [vmem:[#allocation7 + $0x3c] sm:$0xf]
    %v149 = vld [vmem:[%s4] sm:$0x1]
    %v151 = vperm.slane %v149, 0
    %v169 = vunpack.c.l.b16 %v133
    %v170 = vunpack.c.l.b16 %v134
    %v171 = vunpack.c.l.b16 %v135
    %v172 = vunpack.c.l.b16 %v136
    %v173 = vunpack.c.l.b16 %v137
    %v174 = vunpack.c.l.b16 %v138
    %v175 = vunpack.c.l.b16 %v139
    %v176 = vunpack.c.l.b16 %v140
    %v177 = vunpack.c.l.b16 %v141
    %v178 = vunpack.c.l.b16 %v142
    %v179 = vunpack.c.l.b16 %v143
    %v180 = vunpack.c.l.b16 %v144
    %v181 = vunpack.c.l.b16 %v145
    %v182 = vunpack.c.l.b16 %v146
    %v183 = vunpack.c.l.b16 %v147
    %v184 = vunpack.c.l.b16 %v148
    %v185 = vpack.c.b16 %v170, %v169
    %v186 = vpack.c.b16 %v172, %v171
    %v187 = vpack.c.b16 %v174, %v173
    %v188 = vpack.c.b16 %v176, %v175
    %v189 = vpack.c.b16 %v178, %v177
    %v190 = vpack.c.b16 %v180, %v179
    %v191 = vpack.c.b16 %v182, %v181
    %v192 = vpack.c.b16 %v184, %v183
    %201 = vmatpush.bf16.msra.mxu0 %v192
    %202 = vmatpush.bf16.msra.mxu0 %v191
    %203 = vmatpush.bf16.msra.mxu0 %v190
    %204 = vmatpush.bf16.msra.mxu0 %v189
    %205 = vmatpush.bf16.msra.mxu0 %v188
    %206 = vmatpush.bf16.msra.mxu0 %v187
    %207 = vmatpush.bf16.msra.mxu0 %v186
    %208 = vmatpush.bf16.msra.mxu0 %v185
    %209 = vmatmul.bf16.gmra.mxu0 %v132
    %v210 = vpop.f32.mrf.mxu0
    %v211 = vadd.f32 %v151, %v210
    %v212 = vpop.f32.mrf.mxu0
    %v213 = vadd.f32 %v151, %v212
    %214 = vdwg.mxu0
    %v215 = vmax.f32 %v211, 0.0
    %v216 = vmax.f32 %v213, 0.0
    %217 = vrot.lane.b32.xlu0 %v215, 32
    %v218 = vpop.permute.xlu0 %217
    %219 = vrot.lane.b32.xlu0 %v216, 32
    %v220 = vpop.permute.xlu0 %219
    %v221 = vmax.f32 %v215, %v218
    %v222 = vmax.f32 %v216, %v220
    %223 = vrot.lane.b32.xlu0 %v221, 64
    %v224 = vpop.permute.xlu0 %223
    %225 = vrot.lane.b32.xlu0 %v222, 64
    %v226 = vpop.permute.xlu0 %225
    %v227 = vmax.f32 %v221, %v224
    %v228 = vmax.f32 %v222, %v226
    %v229 = vpack.c.bf16 %v227, %v227
    %v230 = vpack.c.bf16 %v228, %v228
    %231 = vst [vmem:[#allocation8] sm:$0xf] %v229
    %232 = vst [vmem:[#allocation8 + $0x4] sm:$0xf] %v230
    // Predicated region
    $region34: #{tpu_custom_call.1} parent=1 // pred_check
      _
    $region35: #{tpu_custom_call.1} parent=1 // pred_check_branch
      %234 = sbr.rel (0) target = $region37
    $region36: #{tpu_custom_call.1} parent=1 // pred_region
      %236 = vsyncadd [#allocation4], 0
      %s237 = sshll.u32 [#allocation8], 4
      %s238 = int_to_ptr.vmem [resolvable:$true] %s237
      %s239 = sshll.u32 %s5, 4
      %s240 = int_to_ptr.hbm [resolvable:$true] %s239
      %245 = dma.vmem_to_hbm [thread:$0]  %s238, 128, %s240, [#allocation4], 64, 64, 4
    $region37: #{tpu_custom_call.1} parent=1 // pred_fallthru
      _
    // Predicated region
    $region38: #{tpu_custom_call.1} parent=1 // pred_check
      _
    $region39: #{tpu_custom_call.1} parent=1 // pred_check_branch
      %247 = sbr.rel (0) target = $region41
    $region40: #{tpu_custom_call.1} parent=1 // pred_region
      %249 = dma.done [#allocation4], 128
    $region41: #{tpu_custom_call.1} parent=1 // pred_fallthru
      _
    %250 = vsyncpa [#allocation3], 1
    %251 = vsyncpa [#allocation6], 1
    %252 = vsyncpa [#allocation4], 1

</llo_original>
